<compile_context>
chip_gen: v7x
topology: tpu7x:2x2x1
jax: 0.10.0
libtpu: 0.0.40
codegen_flags: <defaults>
</compile_context>

<pallas_src>
import math
import functools

import jax
import jax.numpy as jnp
from jax import lax
from jax.experimental import pallas as pl
from jax.experimental.pallas import tpu as pltpu
import numpy as np


# ----------------------------------------------------------------------------
# helpers
# ----------------------------------------------------------------------------
def _pick_tile(n, preferred):
    """Largest power-of-two tile <= preferred that divides n, else n (full dim)."""
    if n <= preferred:
        return n
    t = preferred
    while t >= 8:
        if n % t == 0:
            return t
        t //= 2
    return n


# ----------------------------------------------------------------------------
# Linear (y = x @ W_t + b), row-tiled.  W_t is already transposed: (in, out).
# ----------------------------------------------------------------------------
def _linear_kernel(x_ref, w_ref, b_ref, o_ref):
    acc = jnp.dot(x_ref[...], w_ref[...], preferred_element_type=jnp.float32)
    o_ref[...] = (acc + b_ref[...]).astype(o_ref.dtype)


def _linear(x, w_t, b, *, out_dtype, tile_rows=256):
    M, K = x.shape
    _, N = w_t.shape
    tm = _pick_tile(M, tile_rows)
    return pl.pallas_call(
        _linear_kernel,
        out_shape=jax.ShapeDtypeStruct((M, N), out_dtype),
        grid_spec=pltpu.PrefetchScalarGridSpec(
            num_scalar_prefetch=0,
            grid=(M // tm,),
            in_specs=[
                pl.BlockSpec((tm, K), lambda i: (i, 0)),   # activations
                # constant-index weight / bias blocks (DMA'd once by the
                # pipeline since their block index never changes)
                pl.BlockSpec((K, N), lambda i: (0, 0)),
                pl.BlockSpec((1, N), lambda i: (0, 0)),
            ],
            out_specs=pl.BlockSpec((tm, N), lambda i: (i, 0)),
        ),
        compiler_params=pltpu.CompilerParams(
            dimension_semantics=("parallel",)),
    )(x, w_t, b)


# ----------------------------------------------------------------------------
# Flash attention: grid = (B*H, q_tiles, kv_tiles), kv axis is the reduction.
# q is pre-scaled by 1/sqrt(d_head) (folded into the Q projection weights).
# ----------------------------------------------------------------------------
def _flash_kernel(q_ref, k_ref, v_ref, o_ref, m_sc, l_sc, acc_sc,
                  *, tq, tk, causal):
    qi = pl.program_id(1)
    kv = pl.program_id(2)

    @pl.when(kv == 0)
    def _init():
        m_sc[...] = jnp.full(m_sc.shape, -jnp.inf, dtype=m_sc.dtype)
        l_sc[...] = jnp.zeros(l_sc.shape, dtype=l_sc.dtype)
        acc_sc[...] = jnp.zeros(acc_sc.shape, dtype=acc_sc.dtype)

    def _compute():
        q = q_ref[0]   # (tq, dh) bf16, already scaled
        k = k_ref[0]   # (tk, dh) bf16
        v = v_ref[0]   # (tk, dh) bf16

        # QK^T without an explicit in-kernel transpose: contract last dims.
        s = lax.dot_general(q, k, (((1,), (1,)), ((), ())),
                            preferred_element_type=jnp.float32)   # (tq, tk) f32

        if causal:
            q_pos = qi * tq + lax.broadcasted_iota(jnp.int32, (tq, tk), 0)
            k_pos = kv * tk + lax.broadcasted_iota(jnp.int32, (tq, tk), 1)
            valid = k_pos <= q_pos
            s = jnp.where(valid, s, -1e30)   # finite -> no NaN in online softmax

        m_prev = m_sc[...]                                   # (tq, 1)
        m_new = jnp.maximum(m_prev, jnp.max(s, axis=-1, keepdims=True))
        alpha = jnp.exp(m_prev - m_new)
        p = jnp.exp(s - m_new)                               # (tq, tk) f32
        if causal:
            p = jnp.where(valid, p, 0.0)

        l_sc[...] = alpha * l_sc[...] + jnp.sum(p, axis=-1, keepdims=True)
        acc_sc[...] = alpha * acc_sc[...] + jnp.dot(
            p.astype(v.dtype), v, preferred_element_type=jnp.float32)
        m_sc[...] = m_new

    if causal:
        # Skip kv tiles that lie entirely above the diagonal for this q tile.
        @pl.when(kv * tk <= qi * tq + (tq - 1))
        def _run():
            _compute()
    else:
        _compute()

    @pl.when(kv == pl.num_programs(2) - 1)
    def _finalize():
        inv_l = pl.reciprocal(l_sc[...], approx=True)
        o_ref[0] = (acc_sc[...] * inv_l).astype(o_ref.dtype)


def _flash_attention(q, k, v, *, causal, tile_q=256, tile_k=256):
    BH, S, dh = q.shape
    tq = _pick_tile(S, tile_q)
    tk = _pick_tile(S, tile_k)
    kernel = functools.partial(_flash_kernel, tq=tq, tk=tk, causal=causal)
    return pl.pallas_call(
        kernel,
        out_shape=jax.ShapeDtypeStruct((BH, S, dh), q.dtype),
        grid_spec=pltpu.PrefetchScalarGridSpec(
            num_scalar_prefetch=0,
            grid=(BH, S // tq, S // tk),
            in_specs=[
                pl.BlockSpec((1, tq, dh), lambda bh, qi, ki: (bh, qi, 0)),   # q
                pl.BlockSpec((1, tk, dh), lambda bh, qi, ki: (bh, ki, 0)),   # k
                pl.BlockSpec((1, tk, dh), lambda bh, qi, ki: (bh, ki, 0)),   # v
            ],
            out_specs=pl.BlockSpec((1, tq, dh), lambda bh, qi, ki: (bh, qi, 0)),
            scratch_shapes=[
                pltpu.VMEM((tq, 1), jnp.float32),    # running max m
                pltpu.VMEM((tq, 1), jnp.float32),    # running sum l
                pltpu.VMEM((tq, dh), jnp.float32),   # output accumulator
            ],
        ),
        compiler_params=pltpu.CompilerParams(
            dimension_semantics=("parallel", "parallel", "arbitrary")),
    )(q, k, v)


# ----------------------------------------------------------------------------
# Full SelfAttention forward
# ----------------------------------------------------------------------------
def self_attention(x, w_in, b_in, w_out, b_out, *, n_heads, causal_mask=False,
                   compute_dtype=jnp.bfloat16):
    """x: (B, S, D); w_in: (3D, D); b_in: (3D,); w_out: (D, D); b_out: (D,)."""
    B, S, D = x.shape
    if D % n_heads != 0:
        raise ValueError(f"d_embed={D} must be divisible by n_heads={n_heads}")
    dh = D // n_heads
    scale = 1.0 / math.sqrt(dh)
    f32 = jnp.float32

    # One-time wrapper-side prep: pre-transpose weights (no in-kernel .T) and
    # fold the 1/sqrt(d_head) softmax scale into the Q projection (W and b).
    col_scale = jnp.concatenate(
        [jnp.full((D,), scale, f32), jnp.ones((2 * D,), f32)])
    w_in_t = (w_in.astype(f32).T * col_scale[None, :]).astype(compute_dtype)  # (D, 3D)
    b_in_s = (b_in.astype(f32) * col_scale).reshape(1, 3 * D)                  # f32
    w_out_t = w_out.astype(f32).T.astype(compute_dtype)                        # (D, D)
    b_out_r = b_out.astype(f32).reshape(1, D)

    # 1) in_proj on the MXU (bf16 operands, f32 accumulate).
    x2 = x.reshape(B * S, D).astype(compute_dtype)
    qkv = _linear(x2, w_in_t, b_in_s, out_dtype=compute_dtype)     # (B*S, 3D)

    # Layout plumbing (wrapper-side): split q/k/v and heads -> (B*H, S, dh).
    qkv = qkv.reshape(B, S, 3, n_heads, dh)

    def _heads(t):  # (B, S, H, dh) -> (B*H, S, dh)
        return t.transpose(0, 2, 1, 3).reshape(B * n_heads, S, dh)

    q = _heads(qkv[:, :, 0])
    k = _heads(qkv[:, :, 1])
    v = _heads(qkv[:, :, 2])

    # 2) Flash attention with online softmax (kv-tiled).
    attn = _flash_attention(q, k, v, causal=causal_mask)           # (B*H, S, dh)

    # 3) out_proj.
    attn = (attn.reshape(B, n_heads, S, dh)
                .transpose(0, 2, 1, 3)
                .reshape(B * S, D)
                .astype(compute_dtype))
    out = _linear(attn, w_out_t, b_out_r, out_dtype=x.dtype)       # (B*S, D)
    return out.reshape(B, S, D)


# ----------------------------------------------------------------------------
# Pure-JAX reference mirroring the PyTorch forward (f32)
# ----------------------------------------------------------------------------
def _reference(x, w_in, b_in, w_out, b_out, *, n_heads, causal_mask=False):
    B, S, D = x.shape
    d_head = D // n_heads
    qkv = x @ w_in.T + b_in
    q, k, v = jnp.split(qkv, 3, axis=-1)

    def heads(t):
        return t.reshape(B, S, n_heads, d_head).transpose(0, 2, 1, 3)

    q, k, v = heads(q), heads(k), heads(v)
    w = jnp.einsum("bhqd,bhkd->bhqk", q, k)
    if causal_mask:
        mask = jnp.triu(jnp.ones((S, S), dtype=bool), 1)
        w = jnp.where(mask, -jnp.inf, w)
    w = w / math.sqrt(d_head)
    w = jax.nn.softmax(w, axis=-1)
    o = jnp.einsum("bhqk,bhkd->bhqd", w, v)
    o = o.transpose(0, 2, 1, 3).reshape(B, S, D)
    return o @ w_out.T + b_out


if __name__ == "__main__":
    B, S, D = 2, 8, 32
    n_heads = 4

    key = jax.random.PRNGKey(0)
    kx, kw1, kb1, kw2, kb2 = jax.random.split(key, 5)

    x = jax.random.normal(kx, (B, S, D), dtype=jnp.float32)

    bound_in = 1.0 / math.sqrt(D)
    w_in = jax.random.uniform(kw1, (3 * D, D), jnp.float32, -bound_in, bound_in)
    b_in = jax.random.uniform(kb1, (3 * D,), jnp.float32, -bound_in, bound_in)
    w_out = jax.random.uniform(kw2, (D, D), jnp.float32, -bound_in, bound_in)
    b_out = jax.random.uniform(kb2, (D,), jnp.float32, -bound_in, bound_in)

    # bf16 MXU path -> compare against the f32 reference with loose tolerances.
    out = self_attention(x, w_in, b_in, w_out, b_out,
                         n_heads=n_heads, causal_mask=False)
    out = jax.block_until_ready(out)
    ref = _reference(x, w_in, b_in, w_out, b_out,
                     n_heads=n_heads, causal_mask=False)
    np.testing.assert_allclose(np.asarray(out), np.asarray(ref),
                               rtol=3e-2, atol=3e-2)

    # Causal path.
    out_c = jax.block_until_ready(
        self_attention(x, w_in, b_in, w_out, b_out,
                       n_heads=n_heads, causal_mask=True))
    ref_c = _reference(x, w_in, b_in, w_out, b_out,
                       n_heads=n_heads, causal_mask=True)
    np.testing.assert_allclose(np.asarray(out_c), np.asarray(ref_c),
                               rtol=3e-2, atol=3e-2)

    print("KERNEL_OK")
</pallas_src>

<mosaic_0001>
module attributes {stable_mosaic.version = 11 : i64} {
  func.func @_linear_kernel(%arg0: i32, %arg1: memref<16x32xbf16, #tpu.memory_space<vmem>>, %arg2: memref<32x96xbf16, #tpu.memory_space<vmem>>, %arg3: memref<1x96xf32, #tpu.memory_space<vmem>>, %arg4: memref<16x96xbf16, #tpu.memory_space<vmem>>) attributes {dimension_semantics = [#tpu.dimension_semantics<parallel>], iteration_bounds = array<i64: 1>, scalar_prefetch = 0 : i64, scratch_operands = 0 : i64, tpu.core_type = #tpu.core_type<tc>, window_params = [{transform_indices = @transform_0, window_bounds = array<i64: 16, 32>}, {pipeline_mode = #tpu.pipeline_mode<synchronous>, transform_indices = @transform_1, window_bounds = array<i64: 32, 96>}, {pipeline_mode = #tpu.pipeline_mode<synchronous>, transform_indices = @transform_2, window_bounds = array<i64: 1, 96>}, {transform_indices = @transform_3, window_bounds = array<i64: 16, 96>}]} {
    %c0 = arith.constant 0 : index
    %c0_0 = arith.constant 0 : index
    %0 = vector.load %arg1[%c0, %c0_0] : memref<16x32xbf16, #tpu.memory_space<vmem>>, vector<16x32xbf16>
    %c0_1 = arith.constant 0 : index
    %c0_2 = arith.constant 0 : index
    %1 = vector.load %arg2[%c0_1, %c0_2] : memref<32x96xbf16, #tpu.memory_space<vmem>>, vector<32x96xbf16>
    %cst = arith.constant dense<0.000000e+00> : vector<16x96xf32>
    %2 = tpu.matmul %0, %1, %cst {dimension_numbers = #tpu.dot_dimension_numbers<[1], [0], [0], [1], [0, 0, 1, 1], [], []>} : vector<16x32xbf16>, vector<32x96xbf16>, vector<16x96xf32> -> vector<16x96xf32>
    %c0_3 = arith.constant 0 : index
    %c0_4 = arith.constant 0 : index
    %3 = vector.load %arg3[%c0_3, %c0_4] : memref<1x96xf32, #tpu.memory_space<vmem>>, vector<1x96xf32>
    %4 = vector.broadcast %3 : vector<1x96xf32> to vector<16x96xf32>
    %5 = arith.addf %2, %4 : vector<16x96xf32>
    %6 = arith.truncf %5 : vector<16x96xf32> to vector<16x96xbf16>
    %c0_5 = arith.constant 0 : index
    %c0_6 = arith.constant 0 : index
    %7 = vector.load %arg4[%c0_5, %c0_6] : memref<16x96xbf16, #tpu.memory_space<vmem>>, vector<16x96xbf16>
    tpu.vector_store %arg4[%c0_5, %c0_6], %6 {strides = array<i32>} : memref<16x96xbf16, #tpu.memory_space<vmem>>, vector<16x96xbf16>,
    return
  }
  func.func @transform_0(%arg0: i32) -> (i32, i32) {
    %c0_i32 = arith.constant 0 : i32
    %c0_i32_0 = arith.constant 0 : i32
    return %arg0, %c0_i32 : i32, i32
  }
  func.func @transform_1(%arg0: i32) -> (i32, i32) {
    %c0_i32 = arith.constant 0 : i32
    %c0_i32_0 = arith.constant 0 : i32
    %c0_i32_1 = arith.constant 0 : i32
    return %c0_i32, %c0_i32_0 : i32, i32
  }
  func.func @transform_2(%arg0: i32) -> (i32, i32) {
    %c0_i32 = arith.constant 0 : i32
    %c0_i32_0 = arith.constant 0 : i32
    %c0_i32_1 = arith.constant 0 : i32
    return %c0_i32, %c0_i32_0 : i32, i32
  }
  func.func @transform_3(%arg0: i32) -> (i32, i32) {
    %c0_i32 = arith.constant 0 : i32
    %c0_i32_0 = arith.constant 0 : i32
    return %arg0, %c0_i32 : i32, i32
  }
}

</mosaic_0001>

<llo_original>
// kernel: tpu_custom_call.1
$region0: #{tpu_custom_call.1}
  #allocation0 [shape = 'u32[]', space=smem, size = 0x4, offset = 0x4, fixed_abs, tag = 'smem constant byte address 0x4 - core index']
  #allocation1 [shape = 'u32[144,128]{1,0:T(1,128)}', space=vmem, size = 0x12000, scoped, tag = 'internal scratch']
  %s0 = inlined_call_operand.hbm [shape: bf16[16,32], index: 0, kind: input, shape index: {}]
  %s1 = inlined_call_operand.hbm [shape: bf16[32,96], index: 1, kind: input, shape index: {}]
  %s2 = inlined_call_operand.vmem [shape: f32[1,96], index: 2, kind: input, shape index: {}]
  %s3 = inlined_call_operand.hbm [shape: bf16[16,96], index: 3, kind: output, shape index: {}]
  %s4 = sld [smem:[#allocation0]]
  $region30: #{tpu_custom_call.1} parent=0
    _
  %s6 = ssub.s32 1, %s4
  %s7 = scalar_select 0, %s6, %s4
  $region1: #{tpu_custom_call.1} parent=0
    #allocation2 [shape = 'u8[4096]{0}', space=vmem, size = 0x1000, scoped, tag = 'input window, operand 0, single buffered']
    #allocation3 [shape = 's32[1]{0}', space=sflag, size = 0x4, scoped, tag = 'scoped memory for tpu_custom_call.1']
    #allocation4 [shape = 's32[1]{0}', space=sflag, size = 0x4, scoped, tag = 'scoped memory for tpu_custom_call.1']
    #allocation5 [shape = 'u8[8192]{0}', space=vmem, size = 0x2000, scoped, tag = 'input window, operand 1, single buffered']
    #allocation6 [shape = 's32[1]{0}', space=sflag, size = 0x4, scoped, tag = 'scoped memory for tpu_custom_call.1']
    #allocation7 [shape = 'u8[4096]{0}', space=vmem, size = 0x1000, scoped, tag = 'output window, operand 0, single buffered']
    %8 = vsyncpa [#allocation3], 0
    %9 = vsyncpa [#allocation6], 0
    %10 = vsyncpa [#allocation4], 0
    // Predicated region
    $region2: #{tpu_custom_call.1} parent=1 // pred_check
      _
    $region3: #{tpu_custom_call.1} parent=1 // pred_check_branch
      %12 = sbr.rel (0) target = $region5
    $region4: #{tpu_custom_call.1} parent=1 // pred_region
      %s14 = ssub.s32 128, 128
      %15 = vsyncadd [#allocation3], %s14
      %s16 = sshll.u32 [#allocation2], 4
      %s17 = int_to_ptr.vmem [resolvable:$true] %s16
      %22 = dma.hbm_to_vmem [thread:$0]  %s0, 128, %s17, [#allocation3], 64, 64, 4
    $region5: #{tpu_custom_call.1} parent=1 // pred_fallthru
      _
    // Predicated region
    $region6: #{tpu_custom_call.1} parent=1 // pred_check
      _
    $region7: #{tpu_custom_call.1} parent=1 // pred_check_branch
      %24 = sbr.rel (0) target = $region9
    $region8: #{tpu_custom_call.1} parent=1 // pred_region
      %s26 = ssub.s32 256, 256
      %27 = vsyncadd [#allocation6], %s26
      %s28 = sshll.u32 [#allocation5], 4
      %s29 = int_to_ptr.vmem [resolvable:$true] %s28
      %34 = dma.hbm_to_vmem [thread:$0]  %s1, 256, %s29, [#allocation6], 64, 64, 4
    $region9: #{tpu_custom_call.1} parent=1 // pred_fallthru
      _
    // Predicated region
    $region10: #{tpu_custom_call.1} parent=1 // pred_check
      _
    $region11: #{tpu_custom_call.1} parent=1 // pred_check_branch
      %36 = sbr.rel (0) target = $region13
    $region12: #{tpu_custom_call.1} parent=1 // pred_region
      _
    $region13: #{tpu_custom_call.1} parent=1 // pred_fallthru
      _
    // Predicated region
    $region14: #{tpu_custom_call.1} parent=1 // pred_check
      _
    $region15: #{tpu_custom_call.1} parent=1 // pred_check_branch
      %38 = sbr.rel (0) target = $region17
    $region16: #{tpu_custom_call.1} parent=1 // pred_region
      %39 = dma.done [#allocation3], 128
    $region17: #{tpu_custom_call.1} parent=1 // pred_fallthru
      _
    // Predicated region
    $region18: #{tpu_custom_call.1} parent=1 // pred_check
      _
    $region19: #{tpu_custom_call.1} parent=1 // pred_check_branch
      %41 = sbr.rel (0) target = $region21
    $region20: #{tpu_custom_call.1} parent=1 // pred_region
      %42 = dma.done [#allocation6], 256
    $region21: #{tpu_custom_call.1} parent=1 // pred_fallthru
      _
    %v44 = vld [vmem:[#allocation2] sm:$0xf]
    %v45 = vld [vmem:[#allocation2 + $0x4] sm:$0xf]
    %v46 = vld [vmem:[#allocation5] sm:$0xf]
    %v47 = vld [vmem:[#allocation5 + $0x4] sm:$0xf]
    %v48 = vld [vmem:[#allocation5 + $0x8] sm:$0xf]
    %v49 = vld [vmem:[#allocation5 + $0xc] sm:$0xf]
    %v50 = vld [vmem:[%s2] sm:$0x1]
    %v52 = vlaneseq
    %v53 = vshrl.u32 %v52, 7
    %v54 = vsub.s32 0, %v53
    %v55 = vrot.slane %v50, %v54
    %v59 = vunpack.c.l.b16 %v44
    %v60 = vunpack.c.l.b16 %v45
    %v61 = vpack.c.b16 %v60, %v59
    %v66 = vunpack.c.l.b16 %v46
    %v67 = vunpack.c.l.b16 %v47
    %v68 = vunpack.c.l.b16 %v48
    %v69 = vunpack.c.l.b16 %v49
    %v70 = vpack.c.b16 %v67, %v66
    %v71 = vpack.c.b16 %v69, %v68
    %vm74 = vcmask 261120
    %v76 = vsel %vm74, %v61, 0
    %78 = vmatprep.subr.bf16.mxu0 0
    %79 = vmatpush1.bf16.msra.mxu0 %v70
    %80 = vmatprep.subr.bf16.mxu0 0
    %81 = vmatpush1.bf16.msra.mxu0 %v71
    %82 = vmatprep.subr.bf16.mxu0 0
    %83 = vmatpush1.bf16.msra.mxu0 0
    %84 = vmatprep.subr.bf16.mxu0 0
    %85 = vmatpush1.bf16.msra.mxu0 0
    %86 = vmatprep.subr.bf16.mxu0 0
    %87 = vmatpush1.bf16.msra.mxu0 0
    %88 = vmatprep.subr.bf16.mxu0 0
    %89 = vmatpush1.bf16.msra.mxu0 0
    %90 = vmatprep.subr.bf16.mxu0 0
    %91 = vmatpush1.bf16.msra.mxu0 0
    %92 = vmatprep.subr.bf16.mxu0 0
    %93 = vmatpush1.bf16.msra.mxu0 0
    %94 = vmatprep.subr.bf16.mxu0 0
    %95 = vmatpush1.bf16.msra.mxu0 0
    %96 = vmatprep.subr.bf16.mxu0 0
    %97 = vmatpush1.bf16.msra.mxu0 0
    %98 = vmatprep.subr.bf16.mxu0 0
    %99 = vmatpush1.bf16.msra.mxu0 0
    %100 = vmatprep.subr.bf16.mxu0 0
    %101 = vmatpush1.bf16.msra.mxu0 0
    %102 = vmatprep.subr.bf16.mxu0 0
    %103 = vmatpush1.bf16.msra.mxu0 0
    %104 = vmatprep.subr.bf16.mxu0 0
    %105 = vmatpush1.bf16.msra.mxu0 0
    %106 = vmatprep.subr.bf16.mxu0 0
    %107 = vmatpush1.bf16.msra.mxu0 0
    %108 = vmatprep.subr.bf16.mxu0 0
    %109 = vmatpush1.bf16.msra.mxu0 0
    %110 = vmatprep.mubr.bf16.mxu0 0
    %111 = vmatmul.mubr.bf16.gmra.mrb[0].mxu0 %v76
    %v112 = vpop.f32.mrb[0].mxu0
    %v113 = vadd.f32 %v55, %v112
    %v114 = vpop.f32.mrb[0].mxu0
    %v115 = vpop.f32.mrb[0].mxu0
    %v116 = vadd.f32 %v55, %v115
    %v117 = vpop.f32.mrb[0].mxu0
    %118 = vdwg.mxu0
    %v119 = vpack.c.bf16 %v116, %v113
    %v121 = vunpack.c.l.b16 %v119
    %v122 = vunpack.c.h.b16 %v119
    %v123 = vpack.c.b16 %v121, %v121
    %v124 = vpack.c.b16 %v122, %v122
    %vm127 = vcmask 781312
    %128 = vst.msk [vmem:[#allocation7] sm:$0xf] %vm127, %v123
    %129 = vst.msk [vmem:[#allocation7 + $0x4] sm:$0xf] %vm127, %v124
    // Predicated region
    $region22: #{tpu_custom_call.1} parent=1 // pred_check
      _
    $region23: #{tpu_custom_call.1} parent=1 // pred_check_branch
      %131 = sbr.rel (0) target = $region25
    $region24: #{tpu_custom_call.1} parent=1 // pred_region
      %s133 = ssub.s32 128, 128
      %134 = vsyncadd [#allocation4], %s133
      %s135 = sshll.u32 [#allocation7], 4
      %s136 = int_to_ptr.vmem [resolvable:$true] %s135
      %141 = dma.vmem_to_hbm [thread:$0]  %s136, 128, %s3, [#allocation4], 64, 64, 4
    $region25: #{tpu_custom_call.1} parent=1 // pred_fallthru
      _
    // Predicated region
    $region26: #{tpu_custom_call.1} parent=1 // pred_check
      _
    $region27: #{tpu_custom_call.1} parent=1 // pred_check_branch
      %143 = sbr.rel (0) target = $region29
    $region28: #{tpu_custom_call.1} parent=1 // pred_region
      %144 = dma.done [#allocation4], 128
    $region29: #{tpu_custom_call.1} parent=1 // pred_fallthru
      _
    %145 = vsyncpa [#allocation3], 1
    %146 = vsyncpa [#allocation6], 1
    %147 = vsyncpa [#allocation4], 1

</llo_original>
